<compile_context>
chip_gen: v7x
topology: tpu7x:2x2x1
jax: 0.10.0
libtpu: 0.0.40
codegen_flags: <defaults>
</compile_context>

<pallas_src>
import math
import jax
import jax.numpy as jnp
from jax.experimental import pallas as pl
from jax.experimental.pallas import tpu as pltpu


# ---------------------------------------------------------------------------
# Schedule buffers — exact port of MultiInputResShift.__init__ register_buffers
# ---------------------------------------------------------------------------
def resshift_schedule(kappa: float = 2.0,
                      p: float = 0.3,
                      min_noise_level: float = 0.04,
                      etas_end: float = 0.99,
                      timesteps: int = 15):
    sqrt_eta_1 = min(min_noise_level / kappa, min_noise_level, math.sqrt(0.001))
    b0 = math.exp(1.0 / float(timesteps - 1) * math.log(etas_end / sqrt_eta_1))
    base = jnp.ones((timesteps,), jnp.float32) * jnp.float32(b0)
    beta = jnp.linspace(0.0, 1.0, timesteps, dtype=jnp.float32) ** p * (timesteps - 1)
    sqrt_sum_eta = jnp.power(base, beta) * jnp.float32(sqrt_eta_1)
    sum_eta = sqrt_sum_eta ** 2
    sum_prev_eta = jnp.roll(sum_eta, 1).at[0].set(0.0)
    sum_alpha = sum_eta - sum_prev_eta
    backward_mean_c1 = sum_prev_eta / sum_eta
    backward_mean_c2 = sum_alpha / sum_eta
    backward_std = kappa * jnp.sqrt(sum_prev_eta * sum_alpha / sum_eta)
    return dict(sqrt_sum_eta=sqrt_sum_eta, sum_eta=sum_eta,
                sum_prev_eta=sum_prev_eta, sum_alpha=sum_alpha,
                backward_mean_c1=backward_mean_c1,
                backward_mean_c2=backward_mean_c2,
                backward_std=backward_std)


# ---------------------------------------------------------------------------
# Pallas kernel: forward_process elementwise hot path (HBM-bandwidth bound)
#   out = c*x + e0*y0 + e1*y1 + s*eps       (per-batch scalars from SMEM)
# ---------------------------------------------------------------------------
def _forward_process_kernel(coef_ref, x_ref, y0_ref, y1_ref, eps_ref, o_ref):
    b = pl.program_id(0)           # batch grid axis (NOT the spatial axis)
    c = coef_ref[b, 0]
    e0 = coef_ref[b, 1]
    e1 = coef_ref[b, 2]
    s = coef_ref[b, 3]
    o_ref[...] = (c * x_ref[...] + e0 * y0_ref[...]
                  + e1 * y1_ref[...] + s * eps_ref[...])


def _choose_tile_rows(rows: int, max_rows: int = 2048) -> int:
    """Largest multiple-of-8 divisor of `rows` that is <= max_rows (or full rows)."""
    if rows <= max_rows or rows % 8 != 0:
        return rows                      # full-extent block is always legal
    tr = max_rows - (max_rows % 8)
    while tr >= 8:
        if rows % tr == 0:
            return tr
        tr -= 8
    return rows


def forward_process_pallas(x, y0, y1, eps, tau, t, schedule, kappa):
    """x, y0, y1, eps: (B, C, H, W) f32 NCHW. tau: (B, 2). t: (B,) int32."""
    B, C, H, W = x.shape
    total = C * H * W
    assert total % 128 == 0, "C*H*W must be a multiple of 128 for lane-dense tiles"
    rows = total // 128
    tile_rows = _choose_tile_rows(rows)          # ~<=1 MiB per-tensor block (f32)
    n_tiles = rows // tile_rows

    # Per-batch scalar coefficients (tiny gather — plain JAX glue), packed into
    # one SMEM array: [c, e0, e1, std] per batch element.
    eta = schedule["sum_eta"][t][:, None] * tau.astype(jnp.float32)      # (B, 2)
    std = (kappa * schedule["sqrt_sum_eta"][t])[:, None]                 # (B, 1)
    c = 1.0 - eta[:, 0:1] - eta[:, 1:2]                                  # (B, 1)
    coef = jnp.concatenate([c, eta, std], axis=1).astype(jnp.float32)    # (B, 4)

    # Sublane-dense view: (B, rows, 128), rows on the sublane axis.
    xf, y0f, y1f, epsf = (a.reshape(B, rows, 128) for a in (x, y0, y1, eps))

    tile_spec = pl.BlockSpec((1, tile_rows, 128), lambda b, j: (b, j, 0))
    smem_spec = pl.BlockSpec(memory_space=pltpu.MemorySpace.SMEM)

    out = pl.pallas_call(
        _forward_process_kernel,
        out_shape=jax.ShapeDtypeStruct((B, rows, 128), x.dtype),
        grid=(B, n_tiles),
        in_specs=[smem_spec, tile_spec, tile_spec, tile_spec, tile_spec],
        out_specs=tile_spec,
        compiler_params=pltpu.CompilerParams(
            dimension_semantics=("parallel", "parallel")),
    )(coef, xf, y0f, y1f, epsf)
    return out.reshape(B, C, H, W)


# ---------------------------------------------------------------------------
# Pure-JAX reference (mirrors the PyTorch forward_process math)
# ---------------------------------------------------------------------------
def forward_process_ref(x, Y, eps, tau, t, schedule, kappa):
    eta = schedule["sum_eta"][t][:, None] * tau                            # (B, 2)
    eta = jnp.transpose(eta[:, :, None, None, None], (1, 0, 2, 3, 4))      # (2,B,1,1,1)
    e_i = jnp.stack([y - x for y in Y])                                    # (2,B,C,H,W)
    mean = x + (eta * e_i).sum(axis=0)
    std = (kappa * schedule["sqrt_sum_eta"][t])[:, None, None, None]
    return mean + std * eps


class MultiInputResShiftPallas:
    def __init__(self, kappa=2.0, p=0.3, min_noise_level=0.04, etas_end=0.99, timesteps=15):
        self.kappa = kappa
        self.timesteps = timesteps
        self.schedule = resshift_schedule(kappa, p, min_noise_level, etas_end, timesteps)

    def forward(self, It, Y0, Y1, tau, t, eps):
        # TODO(synk): flow estimation, feature warping and the Synthesis network are
        # undefined in the provided source; Y0/Y1 stand in for warp0to1[0][:, :3] /
        # warp1to0[0][:, :3], and the returned value is x_t (forward_process output).
        return forward_process_pallas(It, Y0, Y1, eps, tau, t, self.schedule, self.kappa)


if __name__ == "__main__":
    B, C, H, W = 2, 3, 16, 16
    key = jax.random.PRNGKey(0)
    k_it, k_y0, k_y1, k_eps, k_t = jax.random.split(key, 5)

    It = jax.random.normal(k_it, (B, C, H, W), jnp.float32)
    Y0 = jax.random.normal(k_y0, (B, C, H, W), jnp.float32)
    Y1 = jax.random.normal(k_y1, (B, C, H, W), jnp.float32)
    eps = jax.random.normal(k_eps, (B, C, H, W), jnp.float32)      # stands in for randn_like
    tau = jnp.full((B, 2), 0.5, jnp.float32)                       # default tau in forward()
    t = jax.random.randint(k_t, (B,), 1, 15, jnp.int32)            # t ~ randint(1, timesteps)

    model = MultiInputResShiftPallas()
    out = model.forward(It, Y0, Y1, tau, t, eps)
    out = jax.block_until_ready(out)

    ref = forward_process_ref(It, [Y0, Y1], eps, tau, t, model.schedule, model.kappa)
    assert out.shape == (B, C, H, W)
    assert jnp.allclose(out, ref, atol=1e-5, rtol=1e-5), "mismatch vs pure-JAX reference"

    print("KERNEL_OK")
</pallas_src>

<mosaic_0001>
module attributes {stable_mosaic.version = 11 : i64} {
  func.func @_forward_process_kernel(%arg0: i32, %arg1: i32, %arg2: memref<2x4xf32, #tpu.memory_space<smem>>, %arg3: memref<1x6x128xf32, #tpu.memory_space<vmem>>, %arg4: memref<1x6x128xf32, #tpu.memory_space<vmem>>, %arg5: memref<1x6x128xf32, #tpu.memory_space<vmem>>, %arg6: memref<1x6x128xf32, #tpu.memory_space<vmem>>, %arg7: memref<1x6x128xf32, #tpu.memory_space<vmem>>) attributes {dimension_semantics = [#tpu.dimension_semantics<parallel>, #tpu.dimension_semantics<parallel>], iteration_bounds = array<i64: 2, 1>, scalar_prefetch = 0 : i64, scratch_operands = 0 : i64, tpu.core_type = #tpu.core_type<tc>, window_params = [{transform_indices = @transform_0, window_bounds = array<i64: 2, 4>}, {transform_indices = @transform_1, window_bounds = array<i64: 1, 6, 128>}, {transform_indices = @transform_2, window_bounds = array<i64: 1, 6, 128>}, {transform_indices = @transform_3, window_bounds = array<i64: 1, 6, 128>}, {transform_indices = @transform_4, window_bounds = array<i64: 1, 6, 128>}, {transform_indices = @transform_5, window_bounds = array<i64: 1, 6, 128>}]} {
    %0 = arith.index_cast %arg0 : i32 to index
    %c0 = arith.constant 0 : index
    %1 = memref.load %arg2[%0, %c0] : memref<2x4xf32, #tpu.memory_space<smem>>
    %2 = arith.index_cast %arg0 : i32 to index
    %c1 = arith.constant 1 : index
    %3 = memref.load %arg2[%2, %c1] : memref<2x4xf32, #tpu.memory_space<smem>>
    %4 = arith.index_cast %arg0 : i32 to index
    %c2 = arith.constant 2 : index
    %5 = memref.load %arg2[%4, %c2] : memref<2x4xf32, #tpu.memory_space<smem>>
    %6 = arith.index_cast %arg0 : i32 to index
    %c3 = arith.constant 3 : index
    %7 = memref.load %arg2[%6, %c3] : memref<2x4xf32, #tpu.memory_space<smem>>
    %c0_0 = arith.constant 0 : index
    %c0_1 = arith.constant 0 : index
    %c0_2 = arith.constant 0 : index
    %8 = vector.load %arg3[%c0_0, %c0_1, %c0_2] : memref<1x6x128xf32, #tpu.memory_space<vmem>>, vector<1x6x128xf32>
    %9 = vector.broadcast %1 : f32 to vector<1x6x128xf32>
    %10 = arith.mulf %9, %8 : vector<1x6x128xf32>
    %c0_3 = arith.constant 0 : index
    %c0_4 = arith.constant 0 : index
    %c0_5 = arith.constant 0 : index
    %11 = vector.load %arg4[%c0_3, %c0_4, %c0_5] : memref<1x6x128xf32, #tpu.memory_space<vmem>>, vector<1x6x128xf32>
    %12 = vector.broadcast %3 : f32 to vector<1x6x128xf32>
    %13 = arith.mulf %12, %11 : vector<1x6x128xf32>
    %14 = arith.addf %10, %13 : vector<1x6x128xf32>
    %c0_6 = arith.constant 0 : index
    %c0_7 = arith.constant 0 : index
    %c0_8 = arith.constant 0 : index
    %15 = vector.load %arg5[%c0_6, %c0_7, %c0_8] : memref<1x6x128xf32, #tpu.memory_space<vmem>>, vector<1x6x128xf32>
    %16 = vector.broadcast %5 : f32 to vector<1x6x128xf32>
    %17 = arith.mulf %16, %15 : vector<1x6x128xf32>
    %18 = arith.addf %14, %17 : vector<1x6x128xf32>
    %c0_9 = arith.constant 0 : index
    %c0_10 = arith.constant 0 : index
    %c0_11 = arith.constant 0 : index
    %19 = vector.load %arg6[%c0_9, %c0_10, %c0_11] : memref<1x6x128xf32, #tpu.memory_space<vmem>>, vector<1x6x128xf32>
    %20 = vector.broadcast %7 : f32 to vector<1x6x128xf32>
    %21 = arith.mulf %20, %19 : vector<1x6x128xf32>
    %22 = arith.addf %18, %21 : vector<1x6x128xf32>
    %c0_12 = arith.constant 0 : index
    %c0_13 = arith.constant 0 : index
    %c0_14 = arith.constant 0 : index
    %23 = vector.load %arg7[%c0_12, %c0_13, %c0_14] : memref<1x6x128xf32, #tpu.memory_space<vmem>>, vector<1x6x128xf32>
    tpu.vector_store %arg7[%c0_12, %c0_13, %c0_14], %22 {strides = array<i32>} : memref<1x6x128xf32, #tpu.memory_space<vmem>>, vector<1x6x128xf32>,
    return
  }
  func.func @transform_0(%arg0: i32, %arg1: i32) -> (i32, i32) {
    %c0_i32 = arith.constant 0 : i32
    %c0_i32_0 = arith.constant 0 : i32
    %c0_i32_1 = arith.constant 0 : i32
    return %c0_i32, %c0_i32_0 : i32, i32
  }
  func.func @transform_1(%arg0: i32, %arg1: i32) -> (i32, i32, i32) {
    %c0_i32 = arith.constant 0 : i32
    %c0_i32_0 = arith.constant 0 : i32
    return %arg0, %arg1, %c0_i32 : i32, i32, i32
  }
  func.func @transform_2(%arg0: i32, %arg1: i32) -> (i32, i32, i32) {
    %c0_i32 = arith.constant 0 : i32
    %c0_i32_0 = arith.constant 0 : i32
    return %arg0, %arg1, %c0_i32 : i32, i32, i32
  }
  func.func @transform_3(%arg0: i32, %arg1: i32) -> (i32, i32, i32) {
    %c0_i32 = arith.constant 0 : i32
    %c0_i32_0 = arith.constant 0 : i32
    return %arg0, %arg1, %c0_i32 : i32, i32, i32
  }
  func.func @transform_4(%arg0: i32, %arg1: i32) -> (i32, i32, i32) {
    %c0_i32 = arith.constant 0 : i32
    %c0_i32_0 = arith.constant 0 : i32
    return %arg0, %arg1, %c0_i32 : i32, i32, i32
  }
  func.func @transform_5(%arg0: i32, %arg1: i32) -> (i32, i32, i32) {
    %c0_i32 = arith.constant 0 : i32
    %c0_i32_0 = arith.constant 0 : i32
    return %arg0, %arg1, %c0_i32 : i32, i32, i32
  }
}

</mosaic_0001>

<llo_original>
// kernel: tpu_custom_call.1
$region0: #{tpu_custom_call.1}
  #allocation0 [shape = 'u32[]', space=smem, size = 0x4, offset = 0x4, fixed_abs, tag = 'smem constant byte address 0x4 - core index']
  #allocation1 [shape = 'u32[144,128]{1,0:T(1,128)}', space=vmem, size = 0x12000, scoped, tag = 'internal scratch']
  %s0 = inlined_call_operand.vmem [shape: f32[2,4], index: 0, kind: input, shape index: {}]
  %s1 = inlined_call_operand.vmem [shape: f32[2,6,128], index: 1, kind: input, shape index: {}]
  %s2 = inlined_call_operand.vmem [shape: f32[2,6,128], index: 2, kind: input, shape index: {}]
  %s3 = inlined_call_operand.vmem [shape: f32[2,6,128], index: 3, kind: input, shape index: {}]
  %s4 = inlined_call_operand.vmem [shape: f32[2,6,128], index: 4, kind: input, shape index: {}]
  %s5 = inlined_call_operand.vmem [shape: f32[2,6,128], index: 5, kind: output, shape index: {}]
  %s6 = sld [smem:[#allocation0]]
  $region57: #{tpu_custom_call.1} parent=0
    _
  %s8 = ssub.s32 1, %s6
  %s9 = scalar_select 0, %s8, %s6
  $region1: #{tpu_custom_call.1} parent=0
    #allocation2 [shape = 'u8[1024]{0}', space=smem, size = 0x400, scoped, tag = 'input window, operand 0, single buffered']
    #allocation3 [shape = 's32[2]{0}', space=sflag, size = 0x8, scoped, tag = 'scoped memory for tpu_custom_call.1']
    %10 = vsyncpa [#allocation3], 0
    loop: start=0, step=1, limit=4
    $region2: #{tpu_custom_call.1} parent=1 // loop_pre_header
      _
    $region3: #{tpu_custom_call.1} parent=1 // loop_header
      %s12 = sphi 0, %s16
      %p13 = scmp.ge.s32.totalorder %s12, 4
      %s19 = sphi 0, %s31
      %s20 = sphi 0, %s27
      %s21 = sphi 0, %s19
      %s22 = sphi 0, %s20
      %s23 = sphi 0, %s21
      %s24 = sphi 0, %s22
      %s32 = sphi 0, %s32
      %s34 = sphi 0, %s32
      %s35 = sphi 0, %s34
      %s49 = sphi 0, %s35
      %s57 = sphi 0, %s59
      %s60 = sphi 0, %s57
      %s61 = sphi 0, %s60
      %s77 = sphi 0, %s61
      %s85 = sphi 0, %s87
      %s88 = sphi 0, %s85
      %s89 = sphi 0, %s88
      %s105 = sphi 0, %s89
      %s113 = sphi 0, %s115
      %s116 = sphi 0, %s113
      %s117 = sphi 0, %s116
      %s133 = sphi 0, %s117
      %s141 = sphi 0, %s143
      %s144 = sphi 0, %s141
      %s145 = sphi 0, %s144
      %s161 = sphi 0, %s145
      %s169 = sphi 0, %s171
      %s172 = sphi 0, %s169
      %s173 = sphi 0, %s172
      %s189 = sphi 0, %s173
    $region4: #{tpu_custom_call.1} parent=1 // loop_header_branch
      %15 = sbr.rel (%p13) target = $region8
    $region5: #{tpu_custom_call.1} parent=1 // loop_body
      %s17 = ssub.s32 %s12, 1
      %s18 = ssub.s32 %s12, 2
      %s25 = sadd.s32 1, %s20
      %p26 = scmp.ge.s32.totalorder %s25, 1
      %s27 = scalar_select %p26, 0, %s25
      %s28 = sadd.s32 1, %s19
      %s29 = scalar_select %p26, %s28, %s19
      %p30 = scmp.ge.s32.totalorder %s29, 2
      %s31 = scalar_select %p30, 0, %s29
      %s33 = sadd.s32 %s32, 1
      %p36 = scmp.eq.s32.totalorder %s12, 1
      %p37 = scmp.ne.s32.totalorder %s32, %s34
      %p38 = scmp.eq.s32.totalorder %s12, 0
      %p39 = por %p37, %p38
      %p40 = scmp.ne.s32.totalorder %s32, %s34
      %p41 = scmp.eq.s32.totalorder %s17, 1
      %p42 = por %p40, %p41
      %p43 = scmp.ne.s32.totalorder %s34, %s35
      %p44 = scmp.eq.s32.totalorder %s17, 0
      %p45 = por %p43, %p44
      %p46 = scmp.ne.s32.totalorder %s34, %s35
      %p47 = scmp.eq.s32.totalorder %s18, 1
      %p48 = por %p46, %p47
      %p50 = scmp.ne.s32.totalorder %s35, %s49
      %p51 = scmp.eq.s32.totalorder %s18, 0
      %p52 = por %p50, %p51
      %s53 = ssub.s32 %s19, %s31
      %s54 = ssub.s32 %s20, %s27
      %s55 = sor.u32 %s53, %s54
      %p56 = scmp.eq.s32.totalorder %s55, 0
      %s58 = sadd.s32 %s57, 1
      %s59 = scalar_select %p56, %s57, %s58
      %p62 = pneg %p56
      %p63 = scmp.eq.s32.totalorder %s12, 1
      %p64 = por %p62, %p63
      %p65 = scmp.ne.s32.totalorder %s57, %s60
      %p66 = scmp.eq.s32.totalorder %s12, 0
      %p67 = por %p65, %p66
      %p68 = scmp.ne.s32.totalorder %s57, %s60
      %p69 = scmp.eq.s32.totalorder %s17, 1
      %p70 = por %p68, %p69
      %p71 = scmp.ne.s32.totalorder %s60, %s61
      %p72 = scmp.eq.s32.totalorder %s17, 0
      %p73 = por %p71, %p72
      %p74 = scmp.ne.s32.totalorder %s60, %s61
      %p75 = scmp.eq.s32.totalorder %s18, 1
      %p76 = por %p74, %p75
      %p78 = scmp.ne.s32.totalorder %s61, %s77
      %p79 = scmp.eq.s32.totalorder %s18, 0
      %p80 = por %p78, %p79
      %s81 = ssub.s32 %s19, %s31
      %s82 = ssub.s32 %s20, %s27
      %s83 = sor.u32 %s81, %s82
      %p84 = scmp.eq.s32.totalorder %s83, 0
      %s86 = sadd.s32 %s85, 1
      %s87 = scalar_select %p84, %s85, %s86
      %p90 = pneg %p84
      %p91 = scmp.eq.s32.totalorder %s12, 1
      %p92 = por %p90, %p91
      %p93 = scmp.ne.s32.totalorder %s85, %s88
      %p94 = scmp.eq.s32.totalorder %s12, 0
      %p95 = por %p93, %p94
      %p96 = scmp.ne.s32.totalorder %s85, %s88
      %p97 = scmp.eq.s32.totalorder %s17, 1
      %p98 = por %p96, %p97
      %p99 = scmp.ne.s32.totalorder %s88, %s89
      %p100 = scmp.eq.s32.totalorder %s17, 0
      %p101 = por %p99, %p100
      %p102 = scmp.ne.s32.totalorder %s88, %s89
      %p103 = scmp.eq.s32.totalorder %s18, 1
      %p104 = por %p102, %p103
      %p106 = scmp.ne.s32.totalorder %s89, %s105
      %p107 = scmp.eq.s32.totalorder %s18, 0
      %p108 = por %p106, %p107
      %s109 = ssub.s32 %s19, %s31
      %s110 = ssub.s32 %s20, %s27
      %s111 = sor.u32 %s109, %s110
      %p112 = scmp.eq.s32.totalorder %s111, 0
      %s114 = sadd.s32 %s113, 1
      %s115 = scalar_select %p112, %s113, %s114
      %p118 = pneg %p112
      %p119 = scmp.eq.s32.totalorder %s12, 1
      %p120 = por %p118, %p119
      %p121 = scmp.ne.s32.totalorder %s113, %s116
      %p122 = scmp.eq.s32.totalorder %s12, 0
      %p123 = por %p121, %p122
      %p124 = scmp.ne.s32.totalorder %s113, %s116
      %p125 = scmp.eq.s32.totalorder %s17, 1
      %p126 = por %p124, %p125
      %p127 = scmp.ne.s32.totalorder %s116, %s117
      %p128 = scmp.eq.s32.totalorder %s17, 0
      %p129 = por %p127, %p128
      %p130 = scmp.ne.s32.totalorder %s116, %s117
      %p131 = scmp.eq.s32.totalorder %s18, 1
      %p132 = por %p130, %p131
      %p134 = scmp.ne.s32.totalorder %s117, %s133
      %p135 = scmp.eq.s32.totalorder %s18, 0
      %p136 = por %p134, %p135
      %s137 = ssub.s32 %s19, %s31
      %s138 = ssub.s32 %s20, %s27
      %s139 = sor.u32 %s137, %s138
      %p140 = scmp.eq.s32.totalorder %s139, 0
      %s142 = sadd.s32 %s141, 1
      %s143 = scalar_select %p140, %s141, %s142
      %p146 = pneg %p140
      %p147 = scmp.eq.s32.totalorder %s12, 1
      %p148 = por %p146, %p147
      %p149 = scmp.ne.s32.totalorder %s141, %s144
      %p150 = scmp.eq.s32.totalorder %s12, 0
      %p151 = por %p149, %p150
      %p152 = scmp.ne.s32.totalorder %s141, %s144
      %p153 = scmp.eq.s32.totalorder %s17, 1
      %p154 = por %p152, %p153
      %p155 = scmp.ne.s32.totalorder %s144, %s145
      %p156 = scmp.eq.s32.totalorder %s17, 0
      %p157 = por %p155, %p156
      %p158 = scmp.ne.s32.totalorder %s144, %s145
      %p159 = scmp.eq.s32.totalorder %s18, 1
      %p160 = por %p158, %p159
      %p162 = scmp.ne.s32.totalorder %s145, %s161
      %p163 = scmp.eq.s32.totalorder %s18, 0
      %p164 = por %p162, %p163
      %s165 = ssub.s32 %s19, %s31
      %s166 = ssub.s32 %s20, %s27
      %s167 = sor.u32 %s165, %s166
      %p168 = scmp.eq.s32.totalorder %s167, 0
      %s170 = sadd.s32 %s169, 1
      %s171 = scalar_select %p168, %s169, %s170
      %p174 = pneg %p168
      %p175 = scmp.eq.s32.totalorder %s12, 1
      %p176 = por %p174, %p175
      %p177 = scmp.ne.s32.totalorder %s169, %s172
      %p178 = scmp.eq.s32.totalorder %s12, 0
      %p179 = por %p177, %p178
      %p180 = scmp.ne.s32.totalorder %s169, %s172
      %p181 = scmp.eq.s32.totalorder %s17, 1
      %p182 = por %p180, %p181
      %p183 = scmp.ne.s32.totalorder %s172, %s173
      %p184 = scmp.eq.s32.totalorder %s17, 0
      %p185 = por %p183, %p184
      %p186 = scmp.ne.s32.totalorder %s172, %s173
      %p187 = scmp.eq.s32.totalorder %s18, 1
      %p188 = por %p186, %p187
      %p190 = scmp.ne.s32.totalorder %s173, %s189
      %p191 = scmp.eq.s32.totalorder %s18, 0
      %p192 = por %p190, %p191
      %p193 = scmp.le.s32.totalorder 1, %s12
      %p194 = scmp.lt.s32.totalorder %s12, 3
      %p195 = pnand %p193, %p194
      %p196 = pneg %p195
      // Predicated region
      $region9: #{tpu_custom_call.1} parent=5 // pred_check
        _
      $region10: #{tpu_custom_call.1} parent=5 // pred_check_branch
        %198 = sbr.rel (%p195) target = $region12
      $region11: #{tpu_custom_call.1} parent=5 // pred_region
        %s199 = ssub.s32 %s12, 1
        // Predicated region
        $region13: #{tpu_custom_call.1} parent=11 // pred_check
          %p200 = pneg %p45
        $region14: #{tpu_custom_call.1} parent=11 // pred_check_branch
          %202 = sbr.rel (%p200) target = $region16
        $region15: #{tpu_custom_call.1} parent=11 // pred_region
          %s204 = ssub.s32 32, 32
          %205 = vsyncadd [#allocation3], %s204
          %s207 = sshll.u32 %s0, 4
          %s208 = int_to_ptr.vmem [resolvable:$true] %s207
          %210 = dma.vmem_to_smem %s208, 32, [#allocation2], [#allocation3]
        $region16: #{tpu_custom_call.1} parent=11 // pred_fallthru
          _
      $region12: #{tpu_custom_call.1} parent=5 // pred_fallthru
        _
      %p211 = scmp.lt.s32.totalorder %s12, 2
      // Predicated region
      $region17: #{tpu_custom_call.1} parent=5 // pred_check
        %p212 = pneg %p211
      $region18: #{tpu_custom_call.1} parent=5 // pred_check_branch
        %214 = sbr.rel (%p212) target = $region20
      $region19: #{tpu_custom_call.1} parent=5 // pred_region
        // Predicated region
        $region21: #{tpu_custom_call.1} parent=19 // pred_check
          %p215 = pneg %p67
        $region22: #{tpu_custom_call.1} parent=19 // pred_check_branch
          %217 = sbr.rel (%p215) target = $region24
        $region23: #{tpu_custom_call.1} parent=19 // pred_region
          %p218 = scmp.lt.s32.totalorder %s19, 1
          %s219 = scalar_select %p218, %s19, 1
          %p220 = scmp.lt.s32.totalorder %s20, 0
          %s221 = scalar_select %p220, %s20, 0
          %s222 = sadd.s32 %s221, %s219
          %s223 = smul.addr %s222, 8
          %s224 = scalar_lea.vmem %s1, %s223
        $region24: #{tpu_custom_call.1} parent=19 // pred_fallthru
          _
        // Predicated region
        $region25: #{tpu_custom_call.1} parent=19 // pred_check
          %p225 = pneg %p95
        $region26: #{tpu_custom_call.1} parent=19 // pred_check_branch
          %227 = sbr.rel (%p225) target = $region28
        $region27: #{tpu_custom_call.1} parent=19 // pred_region
          %p228 = scmp.lt.s32.totalorder %s19, 1
          %s229 = scalar_select %p228, %s19, 1
          %p230 = scmp.lt.s32.totalorder %s20, 0
          %s231 = scalar_select %p230, %s20, 0
          %s232 = sadd.s32 %s231, %s229
          %s233 = smul.addr %s232, 8
          %s234 = scalar_lea.vmem %s2, %s233
        $region28: #{tpu_custom_call.1} parent=19 // pred_fallthru
          _
        // Predicated region
        $region29: #{tpu_custom_call.1} parent=19 // pred_check
          %p235 = pneg %p123
        $region30: #{tpu_custom_call.1} parent=19 // pred_check_branch
          %237 = sbr.rel (%p235) target = $region32
        $region31: #{tpu_custom_call.1} parent=19 // pred_region
          %p238 = scmp.lt.s32.totalorder %s19, 1
          %s239 = scalar_select %p238, %s19, 1
          %p240 = scmp.lt.s32.totalorder %s20, 0
          %s241 = scalar_select %p240, %s20, 0
          %s242 = sadd.s32 %s241, %s239
          %s243 = smul.addr %s242, 8
          %s244 = scalar_lea.vmem %s3, %s243
        $region32: #{tpu_custom_call.1} parent=19 // pred_fallthru
          _
        // Predicated region
        $region33: #{tpu_custom_call.1} parent=19 // pred_check
          %p245 = pneg %p151
        $region34: #{tpu_custom_call.1} parent=19 // pred_check_branch
          %247 = sbr.rel (%p245) target = $region36
        $region35: #{tpu_custom_call.1} parent=19 // pred_region
          %p248 = scmp.lt.s32.totalorder %s19, 1
          %s249 = scalar_select %p248, %s19, 1
          %p250 = scmp.lt.s32.totalorder %s20, 0
          %s251 = scalar_select %p250, %s20, 0
          %s252 = sadd.s32 %s251, %s249
          %s253 = smul.addr %s252, 8
          %s254 = scalar_lea.vmem %s4, %s253
        $region36: #{tpu_custom_call.1} parent=19 // pred_fallthru
          _
      $region20: #{tpu_custom_call.1} parent=5 // pred_fallthru
        _
      %p255 = scmp.le.s32.totalorder 1, %s12
      %p256 = scmp.lt.s32.totalorder %s12, 3
      %p257 = pnand %p255, %p256
      %p258 = pneg %p257
      // Predicated region
      $region37: #{tpu_custom_call.1} parent=5 // pred_check
        _
      $region38: #{tpu_custom_call.1} parent=5 // pred_check_branch
        %260 = sbr.rel (%p257) target = $region40
      $region39: #{tpu_custom_call.1} parent=5 // pred_region
        %s261 = ssub.s32 %s12, 1
        // Predicated region
        $region41: #{tpu_custom_call.1} parent=39 // pred_check
          %p262 = pneg %p45
        $region42: #{tpu_custom_call.1} parent=39 // pred_check_branch
          %264 = sbr.rel (%p262) target = $region44
        $region43: #{tpu_custom_call.1} parent=39 // pred_region
          %265 = dma.done [#allocation3], 32
        $region44: #{tpu_custom_call.1} parent=39 // pred_fallthru
          _
        %266 = sfence
        %p267 = pneg %p45
        %p268 = pneg %p42
        %p269 = scmp.lt.s32.totalorder %s21, 1
        %s270 = scalar_select %p269, %s21, 1
        %p271 = scmp.lt.s32.totalorder %s22, 0
        %s272 = scalar_select %p271, %s22, 0
        %s273 = sadd.s32 %s272, %s270
        %s274 = smul.addr %s273, 8
        %s275 = scalar_lea.vmem %s1, %s274
        %p276 = pneg %p73
        %p277 = pneg %p70
        %p278 = scmp.lt.s32.totalorder %s21, 1
        %s279 = scalar_select %p278, %s21, 1
        %p280 = scmp.lt.s32.totalorder %s22, 0
        %s281 = scalar_select %p280, %s22, 0
        %s282 = sadd.s32 %s281, %s279
        %s283 = smul.addr %s282, 8
        %s284 = scalar_lea.vmem %s2, %s283
        %p285 = pneg %p101
        %p286 = pneg %p98
        %p287 = scmp.lt.s32.totalorder %s21, 1
        %s288 = scalar_select %p287, %s21, 1
        %p289 = scmp.lt.s32.totalorder %s22, 0
        %s290 = scalar_select %p289, %s22, 0
        %s291 = sadd.s32 %s290, %s288
        %s292 = smul.addr %s291, 8
        %s293 = scalar_lea.vmem %s3, %s292
        %p294 = pneg %p129
        %p295 = pneg %p126
        %p296 = scmp.lt.s32.totalorder %s21, 1
        %s297 = scalar_select %p296, %s21, 1
        %p298 = scmp.lt.s32.totalorder %s22, 0
        %s299 = scalar_select %p298, %s22, 0
        %s300 = sadd.s32 %s299, %s297
        %s301 = smul.addr %s300, 8
        %s302 = scalar_lea.vmem %s4, %s301
        %p303 = pneg %p157
        %p304 = pneg %p154
        %p305 = pneg %p185
        %p306 = pneg %p182
        %p307 = scmp.lt.s32.totalorder %s21, 1
        %s308 = scalar_select %p307, %s21, 1
        %p309 = scmp.lt.s32.totalorder %s22, 0
        %s310 = scalar_select %p309, %s22, 0
        %s311 = sadd.s32 %s310, %s308
        %s312 = smul.addr %s311, 8
        %s313 = scalar_lea.vmem %s5, %s312
        %p314 = scmp.lt.s32.totalorder %s21, 1
        %s315 = scalar_select %p314, %s21, 1
        %p316 = scmp.lt.s32.totalorder %s22, 0
        %s317 = scalar_select %p316, %s22, 0
        %s318 = sadd.s32 %s317, %s315
        %s319 = smul.addr %s318, 8
        %s320 = scalar_lea.vmem %s1, %s319
        %p321 = scmp.lt.s32.totalorder %s21, 1
        %s322 = scalar_select %p321, %s21, 1
        %p323 = scmp.lt.s32.totalorder %s22, 0
        %s324 = scalar_select %p323, %s22, 0
        %s325 = sadd.s32 %s324, %s322
        %s326 = smul.addr %s325, 8
        %s327 = scalar_lea.vmem %s2, %s326
        %p328 = scmp.lt.s32.totalorder %s21, 1
        %s329 = scalar_select %p328, %s21, 1
        %p330 = scmp.lt.s32.totalorder %s22, 0
        %s331 = scalar_select %p330, %s22, 0
        %s332 = sadd.s32 %s331, %s329
        %s333 = smul.addr %s332, 8
        %s334 = scalar_lea.vmem %s3, %s333
        %p335 = scmp.lt.s32.totalorder %s21, 1
        %s336 = scalar_select %p335, %s21, 1
        %p337 = scmp.lt.s32.totalorder %s22, 0
        %s338 = scalar_select %p337, %s22, 0
        %s339 = sadd.s32 %s338, %s336
        %s340 = smul.addr %s339, 8
        %s341 = scalar_lea.vmem %s4, %s340
        %p342 = scmp.lt.s32.totalorder %s21, 1
        %s343 = scalar_select %p342, %s21, 1
        %p344 = scmp.lt.s32.totalorder %s22, 0
        %s345 = scalar_select %p344, %s22, 0
        %s346 = sadd.s32 %s345, %s343
        %s347 = smul.addr %s346, 8
        %s348 = scalar_lea.vmem %s5, %s347
        %s349 = smul.u32 %s21, 128
        %s350 = sld [smem:[#allocation2 + %s349]]
        %s351 = sadd.s32 %s349, 1
        %s352 = sld [smem:[#allocation2 + %s351]]
        %s353 = sadd.s32 %s349, 2
        %s354 = sld [smem:[#allocation2 + %s353]]
        %s355 = sadd.s32 %s349, 3
        %s356 = sld [smem:[#allocation2 + %s355]]
        %v357 = vld [vmem:[%s320] sm:$0x3f]
        %v358 = vstv %s350
        %v359 = vmul.f32 %v358, %v357
        %v360 = vld [vmem:[%s327] sm:$0x3f]
        %v361 = vstv %s352
        %v362 = vmul.f32 %v361, %v360
        %v363 = vadd.f32 %v359, %v362
        %v364 = vld [vmem:[%s334] sm:$0x3f]
        %v365 = vstv %s354
        %v366 = vmul.f32 %v365, %v364
        %v367 = vadd.f32 %v363, %v366
        %v368 = vld [vmem:[%s341] sm:$0x3f]
        %v369 = vstv %s356
        %v370 = vmul.f32 %v369, %v368
        %v371 = vadd.f32 %v367, %v370
        %372 = vst [vmem:[%s348] sm:$0x3f] %v371
        %p373 = scmp.lt.s32.totalorder %s21, 1
        %s374 = scalar_select %p373, %s21, 1
        %p375 = scmp.lt.s32.totalorder %s22, 0
        %s376 = scalar_select %p375, %s22, 0
        %s377 = sadd.s32 %s376, %s374
        %s378 = smul.addr %s377, 8
        %s379 = scalar_lea.vmem %s5, %s378
        // Predicated region
        $region45: #{tpu_custom_call.1} parent=39 // pred_check
          %p380 = pneg %p182
        $region46: #{tpu_custom_call.1} parent=39 // pred_check_branch
          %382 = sbr.rel (%p380) target = $region48
        $region47: #{tpu_custom_call.1} parent=39 // pred_region
          _
        $region48: #{tpu_custom_call.1} parent=39 // pred_fallthru
          _
      $region40: #{tpu_custom_call.1} parent=5 // pred_fallthru
        _
      %p383 = scmp.le.s32.totalorder 2, %s12
      // Predicated region
      $region49: #{tpu_custom_call.1} parent=5 // pred_check
        %p384 = pneg %p383
      $region50: #{tpu_custom_call.1} parent=5 // pred_check_branch
        %386 = sbr.rel (%p384) target = $region52
      $region51: #{tpu_custom_call.1} parent=5 // pred_region
        %s387 = ssub.s32 %s12, 2
        // Predicated region
        $region53: #{tpu_custom_call.1} parent=51 // pred_check
          %p388 = pneg %p188
        $region54: #{tpu_custom_call.1} parent=51 // pred_check_branch
          %390 = sbr.rel (%p388) target = $region56
        $region55: #{tpu_custom_call.1} parent=51 // pred_region
          %p391 = scmp.lt.s32.totalorder %s23, 1
          %s392 = scalar_select %p391, %s23, 1
          %p393 = scmp.lt.s32.totalorder %s24, 0
          %s394 = scalar_select %p393, %s24, 0
          %s395 = sadd.s32 %s394, %s392
          %s396 = smul.addr %s395, 8
          %s397 = scalar_lea.vmem %s5, %s396
        $region56: #{tpu_custom_call.1} parent=51 // pred_fallthru
          _
      $region52: #{tpu_custom_call.1} parent=5 // pred_fallthru
        _
    $region6: #{tpu_custom_call.1} parent=1 // loop_footer
      %s16 = sadd.s32 1, %s12
    $region7: #{tpu_custom_call.1} parent=1 // loop_footer_branch
      %11 = sbr.rel target = $region3
    $region8: #{tpu_custom_call.1} parent=1 // loop_exit
      _
    %398 = vsyncpa [#allocation3], 1
    %s399 = scalar_lea.sflag [#allocation3], 1
    %400 = vsyncpa %s399, 1

</llo_original>
